<compile_context>
chip_gen: v5e
topology: v5e:2x2
jax: 0.10.0
libtpu: 0.0.40
codegen_flags: <defaults>
</compile_context>

<pallas_src>
import jax
import jax.numpy as jnp
from jax.experimental import pallas as pl
from jax.experimental.pallas import tpu as pltpu


def _affine_ch_kernel(ab_ref, x_ref, o_ref):
    # ab_ref: (TR, 2)  [col 0 = alpha, col 1 = beta];  x_ref/o_ref: (TR, THW)
    a = ab_ref[:, 0:1]                       # (TR, 1) -> lane broadcast
    b = ab_ref[:, 1:2]
    o_ref[...] = jax.nn.sigmoid(a * x_ref[...] + b)   # VPU fma + EUP logistic


def _affine_tiles(rows, cols, in_itemsize, out_itemsize,
                  budget_bytes=8 << 20, min_grid_steps=2):
    """Pick (TR, THW) row/lane block sizes.

    TR is a multiple of 8 (or the full row extent if rows < 8); THW is a
    multiple of 128 (or the full lane extent if cols < 128).  The budget
    bounds the double-buffered x + out block footprint.
    """
    elem_bytes = 2 * (in_itemsize + out_itemsize)   # in + out, double-buffered

    # Lane (last-dim) tile.
    if cols < 128:
        thw = cols                                   # full extent (unavoidably masked)
    else:
        base_rows = 8 if rows >= 8 else rows
        cap = budget_bytes // (elem_bytes * base_rows)
        cap = max(128, (cap // 128) * 128)
        thw = min((cols // 128) * 128, cap)

    # Row (sublane) tile.
    if rows < 8:
        tr = rows                                    # full extent
    else:
        cap_r = budget_bytes // (elem_bytes * thw)
        cap_r = max(8, (cap_r // 8) * 8)
        tr = min(max(8, (rows // 8) * 8), cap_r)

    # Make sure v7x's two TensorCores both get work (>= min_grid_steps steps
    # along "parallel" axes); no effect on v5e/v6e beyond tiny tile overhead.
    def steps(t_r, t_c):
        return ((rows + t_r - 1) // t_r) * ((cols + t_c - 1) // t_c)

    while steps(tr, thw) < min_grid_steps:
        if tr > 8:
            tr = max(8, (tr // 2 // 8) * 8)
        elif thw > 128:
            thw = max(128, (thw // 2 // 128) * 128)
        else:
            break
    return tr, thw


def affine_ch(x, alpha, beta):
    """x: (N, C, H, W); alpha, beta: (C, 1, 1) (any shape with C elements).
    Returns sigmoid(alpha * x + beta) with per-channel broadcast."""
    N, C, H, W = x.shape
    rows, cols = N * C, H * W

    x2 = x.reshape(rows, cols)

    # Per-row parameters, fused into a single (rows, 2) array: [:, 0]=alpha, [:, 1]=beta.
    a_row = jnp.broadcast_to(jnp.reshape(alpha, (1, C)), (N, C)).reshape(rows, 1)
    b_row = jnp.broadcast_to(jnp.reshape(beta, (1, C)), (N, C)).reshape(rows, 1)
    ab = jnp.concatenate([a_row, b_row], axis=-1).astype(x.dtype)

    tr, thw = _affine_tiles(rows, cols, x.dtype.itemsize, x.dtype.itemsize)
    grid = (pl.cdiv(rows, tr), pl.cdiv(cols, thw))

    out2 = pl.pallas_call(
        _affine_ch_kernel,
        out_shape=jax.ShapeDtypeStruct((rows, cols), x.dtype),
        grid_spec=pltpu.PrefetchScalarGridSpec(
            num_scalar_prefetch=0,
            grid=grid,
            in_specs=[
                pl.BlockSpec((tr, 2), lambda i, j: (i, 0)),      # alpha/beta
                pl.BlockSpec((tr, thw), lambda i, j: (i, j)),    # x
            ],
            out_specs=pl.BlockSpec((tr, thw), lambda i, j: (i, j)),
        ),
        compiler_params=pltpu.CompilerParams(
            dimension_semantics=("parallel", "parallel"),
        ),
    )(ab, x2)

    return out2.reshape(N, C, H, W)


if __name__ == "__main__":
    key = jax.random.PRNGKey(0)
    N, C, H, W = 2, 4, 16, 16

    kx, ka, kb = jax.random.split(key, 3)
    x = jax.random.normal(kx, (N, C, H, W), dtype=jnp.float32)
    # Module initializes alpha=ones, beta=zeros; use random values so the
    # correctness check is non-trivial (same forward math).
    alpha = jax.random.normal(ka, (C, 1, 1), dtype=jnp.float32) + 1.0
    beta = jax.random.normal(kb, (C, 1, 1), dtype=jnp.float32) * 0.1

    out = affine_ch(x, alpha, beta)
    out = jax.block_until_ready(out)

    # Reference in plain JAX (matches PyTorch: sigmoid(alpha * x + beta)).
    ref = jax.nn.sigmoid(alpha.reshape(1, C, 1, 1) * x + beta.reshape(1, C, 1, 1))
    assert out.shape == (N, C, H, W), out.shape
    assert jnp.allclose(out, ref, atol=1e-6, rtol=1e-5), "mismatch vs reference"

    print("KERNEL_OK")
</pallas_src>

<mosaic_0001>
module attributes {stable_mosaic.version = 11 : i64} {
  func.func @_affine_ch_kernel(%arg0: i32, %arg1: i32, %arg2: memref<8x2xf32, #tpu.memory_space<vmem>>, %arg3: memref<8x128xf32, #tpu.memory_space<vmem>>, %arg4: memref<8x128xf32, #tpu.memory_space<vmem>>) attributes {dimension_semantics = [#tpu.dimension_semantics<parallel>, #tpu.dimension_semantics<parallel>], iteration_bounds = array<i64: 1, 2>, scalar_prefetch = 0 : i64, scratch_operands = 0 : i64, tpu.core_type = #tpu.core_type<tc>, window_params = [{transform_indices = @transform_0, window_bounds = array<i64: 8, 2>}, {transform_indices = @transform_1, window_bounds = array<i64: 8, 128>}, {transform_indices = @transform_2, window_bounds = array<i64: 8, 128>}]} {
    %c0 = arith.constant 0 : index
    %c0_0 = arith.constant 0 : index
    %0 = vector.load %arg2[%c0, %c0_0] : memref<8x2xf32, #tpu.memory_space<vmem>>, vector<8x1xf32>
    %c0_1 = arith.constant 0 : index
    %c1 = arith.constant 1 : index
    %1 = vector.load %arg2[%c0_1, %c1] : memref<8x2xf32, #tpu.memory_space<vmem>>, vector<8x1xf32>
    %c0_2 = arith.constant 0 : index
    %c0_3 = arith.constant 0 : index
    %2 = vector.load %arg3[%c0_2, %c0_3] : memref<8x128xf32, #tpu.memory_space<vmem>>, vector<8x128xf32>
    %3 = vector.broadcast %0 : vector<8x1xf32> to vector<8x128xf32>
    %4 = arith.mulf %3, %2 : vector<8x128xf32>
    %5 = vector.broadcast %1 : vector<8x1xf32> to vector<8x128xf32>
    %6 = arith.addf %4, %5 : vector<8x128xf32>
    %7 = arith.negf %6 : vector<8x128xf32>
    %8 = math.exp %7 : vector<8x128xf32>
    %cst = arith.constant 1.000000e+00 : f32
    %9 = vector.broadcast %cst : f32 to vector<8x128xf32>
    %10 = arith.addf %9, %8 : vector<8x128xf32>
    %11 = arith.divf %9, %10 : vector<8x128xf32>
    %c0_4 = arith.constant 0 : index
    %c0_5 = arith.constant 0 : index
    %12 = vector.load %arg4[%c0_4, %c0_5] : memref<8x128xf32, #tpu.memory_space<vmem>>, vector<8x128xf32>
    tpu.vector_store %arg4[%c0_4, %c0_5], %11 {strides = array<i32>} : memref<8x128xf32, #tpu.memory_space<vmem>>, vector<8x128xf32>,
    return
  }
  func.func @transform_0(%arg0: i32, %arg1: i32) -> (i32, i32) {
    %c0_i32 = arith.constant 0 : i32
    %c0_i32_0 = arith.constant 0 : i32
    return %arg0, %c0_i32 : i32, i32
  }
  func.func @transform_1(%arg0: i32, %arg1: i32) -> (i32, i32) {
    %c0_i32 = arith.constant 0 : i32
    return %arg0, %arg1 : i32, i32
  }
  func.func @transform_2(%arg0: i32, %arg1: i32) -> (i32, i32) {
    %c0_i32 = arith.constant 0 : i32
    return %arg0, %arg1 : i32, i32
  }
}

</mosaic_0001>

<llo_original>
// kernel: tpu_custom_call.1
$region0: #{tpu_custom_call.1}
  #allocation0 [shape = 'u32[]', space=smem, size = 0x4, offset = 0x4, fixed_abs, tag = 'smem constant byte address 0x4 - core index']
  #allocation1 [shape = 'u32[72,128]{1,0:T(1,128)}', space=vmem, size = 0x9000, scoped, tag = 'internal scratch']
  %s0 = inlined_call_operand.vmem [shape: f32[8,2], index: 0, kind: input, shape index: {}]
  %s1 = inlined_call_operand.hbm [shape: f32[8,256], index: 1, kind: input, shape index: {}]
  %s2 = inlined_call_operand.hbm [shape: f32[8,256], index: 2, kind: output, shape index: {}]
  %s3 = sld [smem:[#allocation0]]
  $region45: #{tpu_custom_call.1} parent=0
    _
  %s5 = ssub.s32 1, %s3
  %s6 = scalar_select 0, %s5, %s3
  $region1: #{tpu_custom_call.1} parent=0
    #allocation2 [shape = 'u8[8192]{0}', space=vmem, size = 0x2000, scoped, tag = 'input window, operand 1']
    #allocation3 [shape = 's32[2]{0}', space=sflag, size = 0x8, scoped, tag = 'scoped memory for tpu_custom_call.1']
    #allocation4 [shape = 's32[2]{0}', space=sflag, size = 0x8, scoped, tag = 'scoped memory for tpu_custom_call.1']
    #allocation5 [shape = 'u8[8192]{0}', space=vmem, size = 0x2000, scoped, tag = 'output window, operand 0']
    %7 = vsyncpa [#allocation3], 0
    %s8 = scalar_lea.sflag [#allocation3], 1
    %9 = vsyncpa %s8, 0
    %10 = vsyncpa [#allocation4], 0
    %s11 = scalar_lea.sflag [#allocation4], 1
    %12 = vsyncpa %s11, 0
    loop: start=0, step=1, limit=4
    $region2: #{tpu_custom_call.1} parent=1 // loop_pre_header
      _
    $region3: #{tpu_custom_call.1} parent=1 // loop_header
      %s14 = sphi 0, %s18
      %p15 = scmp.ge.s32.totalorder %s14, 4
      %s21 = sphi 0, %s33
      %s22 = sphi 0, %s29
      %s23 = sphi 0, %s21
      %s24 = sphi 0, %s22
      %s25 = sphi 0, %s23
      %s26 = sphi 0, %s24
      %s36 = sphi 0, %s38
      %s39 = sphi 0, %s36
      %s40 = sphi 0, %s39
      %s56 = sphi 0, %s40
      %s64 = sphi 0, %s66
      %s67 = sphi 0, %s64
      %s68 = sphi 0, %s67
      %s84 = sphi 0, %s68
      %s92 = sphi 0, %s94
      %s95 = sphi 0, %s92
      %s96 = sphi 0, %s95
      %s112 = sphi 0, %s96
    $region4: #{tpu_custom_call.1} parent=1 // loop_header_branch
      %17 = sbr.rel (%p15) target = $region8
    $region5: #{tpu_custom_call.1} parent=1 // loop_body
      %s19 = ssub.s32 %s14, 1
      %s20 = ssub.s32 %s14, 2
      %s27 = sadd.s32 1, %s22
      %p28 = scmp.ge.s32.totalorder %s27, 2
      %s29 = scalar_select %p28, 0, %s27
      %s30 = sadd.s32 1, %s21
      %s31 = scalar_select %p28, %s30, %s21
      %p32 = scmp.ge.s32.totalorder %s31, 1
      %s33 = scalar_select %p32, 0, %s31
      %s34 = ssub.s32 %s21, %s33
      %p35 = scmp.eq.s32.totalorder %s34, 0
      %s37 = sadd.s32 %s36, 1
      %s38 = scalar_select %p35, %s36, %s37
      %p41 = pneg %p35
      %p42 = scmp.eq.s32.totalorder %s14, 1
      %p43 = por %p41, %p42
      %p44 = scmp.ne.s32.totalorder %s36, %s39
      %p45 = scmp.eq.s32.totalorder %s14, 0
      %p46 = por %p44, %p45
      %p47 = scmp.ne.s32.totalorder %s36, %s39
      %p48 = scmp.eq.s32.totalorder %s19, 1
      %p49 = por %p47, %p48
      %p50 = scmp.ne.s32.totalorder %s39, %s40
      %p51 = scmp.eq.s32.totalorder %s19, 0
      %p52 = por %p50, %p51
      %p53 = scmp.ne.s32.totalorder %s39, %s40
      %p54 = scmp.eq.s32.totalorder %s20, 1
      %p55 = por %p53, %p54
      %p57 = scmp.ne.s32.totalorder %s40, %s56
      %p58 = scmp.eq.s32.totalorder %s20, 0
      %p59 = por %p57, %p58
      %s60 = ssub.s32 %s21, %s33
      %s61 = ssub.s32 %s22, %s29
      %s62 = sor.u32 %s60, %s61
      %p63 = scmp.eq.s32.totalorder %s62, 0
      %s65 = sadd.s32 %s64, 1
      %s66 = scalar_select %p63, %s64, %s65
      %p69 = pneg %p63
      %p70 = scmp.eq.s32.totalorder %s14, 1
      %p71 = por %p69, %p70
      %p72 = scmp.ne.s32.totalorder %s64, %s67
      %p73 = scmp.eq.s32.totalorder %s14, 0
      %p74 = por %p72, %p73
      %p75 = scmp.ne.s32.totalorder %s64, %s67
      %p76 = scmp.eq.s32.totalorder %s19, 1
      %p77 = por %p75, %p76
      %p78 = scmp.ne.s32.totalorder %s67, %s68
      %p79 = scmp.eq.s32.totalorder %s19, 0
      %p80 = por %p78, %p79
      %p81 = scmp.ne.s32.totalorder %s67, %s68
      %p82 = scmp.eq.s32.totalorder %s20, 1
      %p83 = por %p81, %p82
      %p85 = scmp.ne.s32.totalorder %s68, %s84
      %p86 = scmp.eq.s32.totalorder %s20, 0
      %p87 = por %p85, %p86
      %s88 = ssub.s32 %s21, %s33
      %s89 = ssub.s32 %s22, %s29
      %s90 = sor.u32 %s88, %s89
      %p91 = scmp.eq.s32.totalorder %s90, 0
      %s93 = sadd.s32 %s92, 1
      %s94 = scalar_select %p91, %s92, %s93
      %p97 = pneg %p91
      %p98 = scmp.eq.s32.totalorder %s14, 1
      %p99 = por %p97, %p98
      %p100 = scmp.ne.s32.totalorder %s92, %s95
      %p101 = scmp.eq.s32.totalorder %s14, 0
      %p102 = por %p100, %p101
      %p103 = scmp.ne.s32.totalorder %s92, %s95
      %p104 = scmp.eq.s32.totalorder %s19, 1
      %p105 = por %p103, %p104
      %p106 = scmp.ne.s32.totalorder %s95, %s96
      %p107 = scmp.eq.s32.totalorder %s19, 0
      %p108 = por %p106, %p107
      %p109 = scmp.ne.s32.totalorder %s95, %s96
      %p110 = scmp.eq.s32.totalorder %s20, 1
      %p111 = por %p109, %p110
      %p113 = scmp.ne.s32.totalorder %s96, %s112
      %p114 = scmp.eq.s32.totalorder %s20, 0
      %p115 = por %p113, %p114
      %p116 = scmp.le.s32.totalorder 1, %s14
      %p117 = scmp.lt.s32.totalorder %s14, 3
      %p118 = pnand %p116, %p117
      %p119 = pneg %p118
      // Predicated region
      $region9: #{tpu_custom_call.1} parent=5 // pred_check
        _
      $region10: #{tpu_custom_call.1} parent=5 // pred_check_branch
        %121 = sbr.rel (%p118) target = $region12
      $region11: #{tpu_custom_call.1} parent=5 // pred_region
        %s122 = ssub.s32 %s14, 1
        // Predicated region
        $region13: #{tpu_custom_call.1} parent=11 // pred_check
          %p123 = pneg %p52
        $region14: #{tpu_custom_call.1} parent=11 // pred_check_branch
          %125 = sbr.rel (%p123) target = $region16
        $region15: #{tpu_custom_call.1} parent=11 // pred_region
          %p126 = scmp.lt.s32.totalorder %s23, 0
          %s127 = scalar_select %p126, %s23, 0
          %s128 = smul.addr %s127, 8
          %s129 = scalar_lea.vmem %s0, %s128
        $region16: #{tpu_custom_call.1} parent=11 // pred_fallthru
          _
      $region12: #{tpu_custom_call.1} parent=5 // pred_fallthru
        _
      %p130 = scmp.lt.s32.totalorder %s14, 2
      // Predicated region
      $region17: #{tpu_custom_call.1} parent=5 // pred_check
        %p131 = pneg %p130
      $region18: #{tpu_custom_call.1} parent=5 // pred_check_branch
        %133 = sbr.rel (%p131) target = $region20
      $region19: #{tpu_custom_call.1} parent=5 // pred_region
        // Predicated region
        $region21: #{tpu_custom_call.1} parent=19 // pred_check
          %p134 = pneg %p74
        $region22: #{tpu_custom_call.1} parent=19 // pred_check_branch
          %136 = sbr.rel (%p134) target = $region24
        $region23: #{tpu_custom_call.1} parent=19 // pred_region
          %s137 = sand.u32 %s64, 1
          %s138 = scalar_lea.sflag [#allocation3], %s137
          %s139 = sand.u32 %s64, 1
          %s140 = smul.addr %s139, 8
          %s141 = scalar_lea.vmem [#allocation2], %s140
          %143 = vsyncadd %s138, 0
          %s144 = smul.addr %s21, 2
          %s145 = sadd.s32 %s22, %s144
          %s146 = smul.addr %s145, 8
          %s147 = scalar_lea.hbm %s1, %s146
          %s149 = sshll.u32 %s147, 4
          %s150 = int_to_ptr.hbm [resolvable:$true] %s149
          %s151 = sshll.u32 %s141, 4
          %s152 = int_to_ptr.vmem [resolvable:$true] %s151
          %154 = dma.hbm_to_vmem [thread:$0]  %s150, 128, %s152, %s138
        $region24: #{tpu_custom_call.1} parent=19 // pred_fallthru
          _
      $region20: #{tpu_custom_call.1} parent=5 // pred_fallthru
        _
      %p155 = scmp.le.s32.totalorder 1, %s14
      %p156 = scmp.lt.s32.totalorder %s14, 3
      %p157 = pnand %p155, %p156
      %p158 = pneg %p157
      // Predicated region
      $region25: #{tpu_custom_call.1} parent=5 // pred_check
        _
      $region26: #{tpu_custom_call.1} parent=5 // pred_check_branch
        %160 = sbr.rel (%p157) target = $region28
      $region27: #{tpu_custom_call.1} parent=5 // pred_region
        %s161 = ssub.s32 %s14, 1
        %s162 = sand.u32 %s67, 1
        %s163 = scalar_lea.sflag [#allocation3], %s162
        %s164 = sand.u32 %s67, 1
        %s165 = smul.addr %s164, 8
        %s166 = scalar_lea.vmem [#allocation2], %s165
        // Predicated region
        $region29: #{tpu_custom_call.1} parent=27 // pred_check
          %p167 = pneg %p80
        $region30: #{tpu_custom_call.1} parent=27 // pred_check_branch
          %169 = sbr.rel (%p167) target = $region32
        $region31: #{tpu_custom_call.1} parent=27 // pred_region
          %171 = dma.done %s163, 128
        $region32: #{tpu_custom_call.1} parent=27 // pred_fallthru
          _
        %p172 = scmp.lt.s32.totalorder %s23, 0
        %s173 = scalar_select %p172, %s23, 0
        %s174 = smul.addr %s173, 8
        %s175 = scalar_lea.vmem %s0, %s174
        %p176 = pneg %p52
        %p177 = pneg %p49
        %s178 = sand.u32 %s67, 1
        %s179 = scalar_lea.sflag [#allocation3], %s178
        %s180 = sand.u32 %s67, 1
        %s181 = smul.addr %s180, 8
        %s182 = scalar_lea.vmem [#allocation2], %s181
        %p183 = pneg %p80
        %p184 = pneg %p77
        %p185 = pneg %p108
        %p186 = pneg %p105
        %s187 = sand.u32 %s95, 1
        %s188 = scalar_lea.sflag [#allocation4], %s187
        %s189 = sand.u32 %s95, 1
        %s190 = smul.addr %s189, 8
        %s191 = scalar_lea.vmem [#allocation5], %s190
        %p192 = scmp.lt.s32.totalorder %s23, 0
        %s193 = scalar_select %p192, %s23, 0
        %s194 = smul.addr %s193, 8
        %s195 = scalar_lea.vmem %s0, %s194
        %v196 = vld [vmem:[%s195] sm:$0xff]
        %v197 = vld [vmem:[%s166] sm:$0xff]
        %199 = vset.pattern.permute.xlu0 0
        %200 = vperm.xlu0 %199, %v196
        %v201 = vpop.permute.xlu0 %200
        %v203 = vmul.f32 %v201, %v197
        %204 = vset.pattern.permute.xlu0 1
        %205 = vperm.xlu0 %204, %v196
        %v206 = vpop.permute.xlu0 %205
        %v208 = vadd.f32 %v203, %v206
        %v209 = vxor.u32 %v208, 2147483648
        %v210 = vmul.f32 %v209, 1.442695
        %v211 = vpow.pop %v210
        %v212 = vadd.f32 %v211, 1.0
        %v213 = vrcp.pop %v212
        %v214 = vmul.f32 %v212, %v213
        %v215 = vsub.f32 1.0, %v214
        %v216 = vmul.f32 %v213, %v215
        %v217 = vadd.f32 %v213, %v216
        %vm218 = vweird.f32 %v212
        %vm219 = vweird.f32 %v213
        %vm220 = vmor %vm218, %vm219
        %v221 = vsel %vm220, %v213, %v217
        %v222 = vand.u32 2147483647, %v212
        %vm223 = vcmp.eq.f32.partialorder %v222, 8.507059e+37
        %v224 = vand.u32 %v212, 2147483648
        %v225 = vor.u32 1.1754944e-38, %v224
        %v226 = vsel %vm223, %v225, %v221
        %v227 = vmul.f32 1.0, %v226
        %228 = vst [vmem:[%s191] sm:$0xff] %v227
        %s229 = sand.u32 %s95, 1
        %s230 = scalar_lea.sflag [#allocation4], %s229
        %s231 = sand.u32 %s95, 1
        %s232 = smul.addr %s231, 8
        %s233 = scalar_lea.vmem [#allocation5], %s232
        // Predicated region
        $region33: #{tpu_custom_call.1} parent=27 // pred_check
          %p234 = pneg %p105
        $region34: #{tpu_custom_call.1} parent=27 // pred_check_branch
          %236 = sbr.rel (%p234) target = $region36
        $region35: #{tpu_custom_call.1} parent=27 // pred_region
          %238 = vsyncadd %s230, 0
          %s239 = smul.addr %s23, 2
          %s240 = sadd.s32 %s24, %s239
          %s241 = smul.addr %s240, 8
          %s242 = scalar_lea.hbm %s2, %s241
          %s244 = sshll.u32 %s233, 4
          %s245 = int_to_ptr.vmem [resolvable:$true] %s244
          %s246 = sshll.u32 %s242, 4
          %s247 = int_to_ptr.hbm [resolvable:$true] %s246
          %249 = dma.vmem_to_hbm [thread:$0]  %s245, 128, %s247, %s230
        $region36: #{tpu_custom_call.1} parent=27 // pred_fallthru
          _
      $region28: #{tpu_custom_call.1} parent=5 // pred_fallthru
        _
      %p250 = scmp.le.s32.totalorder 2, %s14
      // Predicated region
      $region37: #{tpu_custom_call.1} parent=5 // pred_check
        %p251 = pneg %p250
      $region38: #{tpu_custom_call.1} parent=5 // pred_check_branch
        %253 = sbr.rel (%p251) target = $region40
      $region39: #{tpu_custom_call.1} parent=5 // pred_region
        %s254 = ssub.s32 %s14, 2
        // Predicated region
        $region41: #{tpu_custom_call.1} parent=39 // pred_check
          %p255 = pneg %p111
        $region42: #{tpu_custom_call.1} parent=39 // pred_check_branch
          %257 = sbr.rel (%p255) target = $region44
        $region43: #{tpu_custom_call.1} parent=39 // pred_region
          %s258 = sand.u32 %s96, 1
          %s259 = scalar_lea.sflag [#allocation4], %s258
          %s260 = sand.u32 %s96, 1
          %s261 = smul.addr %s260, 8
          %s262 = scalar_lea.vmem [#allocation5], %s261
          %264 = dma.done %s259, 128
        $region44: #{tpu_custom_call.1} parent=39 // pred_fallthru
          _
      $region40: #{tpu_custom_call.1} parent=5 // pred_fallthru
        _
    $region6: #{tpu_custom_call.1} parent=1 // loop_footer
      %s18 = sadd.s32 1, %s14
    $region7: #{tpu_custom_call.1} parent=1 // loop_footer_branch
      %13 = sbr.rel target = $region3
    $region8: #{tpu_custom_call.1} parent=1 // loop_exit
      _
    %265 = vsyncpa [#allocation3], 1
    %s266 = scalar_lea.sflag [#allocation3], 1
    %267 = vsyncpa %s266, 1
    %268 = vsyncpa [#allocation4], 1
    %s269 = scalar_lea.sflag [#allocation4], 1
    %270 = vsyncpa %s269, 1

</llo_original>
